<compile_context>
chip_gen: v7x
topology: tpu7x:2x2x1
jax: 0.10.0
libtpu: 0.0.40
codegen_flags: <defaults>
</compile_context>

<pallas_src>
import jax
import jax.numpy as jnp
from jax import lax
from jax.experimental import pallas as pl
from jax.experimental.pallas import tpu as pltpu


def _round_up(x, m):
    return (x + m - 1) // m * m


# ----------------------------------------------------------------------------
# Kernel
# ----------------------------------------------------------------------------
def _temporal_attn_kernel(x_ref, w_ref, b_ref, o_ref):
    bB, S, H = x_ref.shape
    Hp = w_ref.shape[1] // 3          # lane-padded per-projection width (k*128)

    # Fused QKV projection: one (bB*S, H) x (H, 3*Hp) MXU matmul.
    # NOTE: collapsing (bB, S) assumes S % 8 == 0 (sublane aligned).
    # TODO(synk): for S not a multiple of 8, pad S in the wrapper instead.
    x2 = x_ref[...].reshape(bB * S, H)
    qkv = jnp.dot(x2, w_ref[...], preferred_element_type=jnp.float32)
    qkv = qkv + b_ref[...]                                   # (bB*S, 3*Hp), f32

    # Each projection starts on its own 128-lane tile -> zero-cost slices.
    # 1/sqrt(H) is already folded into the Q weights/bias.
    q = qkv[:, 0 * Hp:1 * Hp].reshape(bB, S, Hp)
    k = qkv[:, 1 * Hp:2 * Hp].reshape(bB, S, Hp)
    v = qkv[:, 2 * Hp:3 * Hp].reshape(bB, S, Hp)

    # scores[b, q, k]: contract the hidden dim directly (no explicit K^T).
    scores = lax.dot_general(
        q, k, dimension_numbers=(((2,), (2,)), ((0,), (0,))),
        preferred_element_type=jnp.float32)                  # (bB, S, S)

    # Numerically stable softmax numerator / per-row denominators.
    m = jnp.max(scores, axis=-1, keepdims=True)
    e = jnp.exp(scores - m)                                  # (bB, S, S)
    denom = jnp.sum(e, axis=-1, keepdims=True)               # (bB, S, 1)
    recip = (1.0 / denom).reshape(bB, 1, S)                  # exact; tiny (bB*S)

    # Row-normalize AND sum over queries in one MXU matmul:
    #   sum_q softmax(scores)[q, :] == recip_row @ e
    attn_sum = lax.dot_general(
        recip, e, dimension_numbers=(((2,), (1,)), ((0,), (0,))),
        preferred_element_type=jnp.float32)                  # (bB, 1, S)

    # (sum_q attn) @ V  ==  sum_q (attn @ V)
    out = lax.dot_general(
        attn_sum, v, dimension_numbers=(((2,), (1,)), ((0,), (0,))),
        preferred_element_type=jnp.float32)                  # (bB, 1, Hp)

    o_ref[...] = out.reshape(bB, Hp).astype(o_ref.dtype)     # lane-dense write


# ----------------------------------------------------------------------------
# Parameter preparation (do ONCE per parameter update, not per forward call)
# ----------------------------------------------------------------------------
def prepare_qkv_params(wq, bq, wk, bk, wv, bv, *, matmul_dtype=jnp.float32):
    """Fuse W_q/W_k/W_v (PyTorch (out, in) layout) into one (H, 3*Hp) matrix.

    1/sqrt(H) is folded into the Q weights/bias; each projection's output is
    padded to Hp = round_up(H, 128) lanes so in-kernel slices are tile-aligned
    and the output block is lane-dense.  For production sizes pass
    matmul_dtype=jnp.bfloat16 (bias stays f32; it is added post-matmul)."""
    H = wq.shape[0]
    Hp = _round_up(H, 128)
    scale = 1.0 / float(H) ** 0.5

    def pad_cols(w):                     # (H, H) -> (H, Hp), zero-padded lanes
        return jnp.pad(w, ((0, 0), (0, Hp - H)))

    def pad_vec(b):                      # (H,) -> (Hp,)
        return jnp.pad(b, (0, Hp - H))

    w_qkv = jnp.concatenate(
        [pad_cols(wq.T * scale), pad_cols(wk.T), pad_cols(wv.T)],
        axis=1).astype(matmul_dtype)                             # (H, 3*Hp)
    b_qkv = jnp.concatenate(
        [pad_vec(bq * scale), pad_vec(bk), pad_vec(bv)]
    ).reshape(1, 3 * Hp).astype(jnp.float32)                     # (1, 3*Hp)
    return w_qkv, b_qkv


# ----------------------------------------------------------------------------
# Generation-aware sizing helpers
# ----------------------------------------------------------------------------
def _vmem_capacity_bytes():
    try:
        cap = getattr(pltpu.get_tpu_info(), "vmem_capacity_bytes", None)
        if cap:
            return int(cap)
    except Exception:
        pass
    return 64 << 20  # conservative default (v7x per-TensorCore)


def _num_tensorcores_per_chip():
    try:
        dev = jax.devices()[0]
        n = getattr(dev, "num_cores", None)
        if n:
            return int(n)
        kind = str(getattr(dev, "device_kind", "")).lower()
        if "v7" in kind or "7x" in kind:
            return 2
    except Exception:
        pass
    return 1


def _pick_batch_block(B, per_batch_bytes, fixed_bytes, budget, min_steps):
    """Largest divisor of B that fits the VMEM budget; keep >= min_steps grid
    steps only when the chip actually has multiple TensorCores."""
    divisors = [d for d in range(1, B + 1) if B % d == 0]
    fits = [d for d in divisors if fixed_bytes + d * per_batch_bytes <= budget]
    if not fits:
        return 1
    stepped = [d for d in fits if (B // d) >= min_steps]
    return max(stepped) if stepped else max(fits)


# ----------------------------------------------------------------------------
# Forward wrapper
# ----------------------------------------------------------------------------
def temporal_attention(hidden_states, w_qkv, b_qkv, *, batch_block=None):
    """hidden_states: (B, S, H); (w_qkv, b_qkv) from prepare_qkv_params.
    Returns (B, H) = sum over the sequence of softmax(QK^T/sqrt(H)) @ V."""
    B, S, H = hidden_states.shape
    Hp = w_qkv.shape[1] // 3
    assert w_qkv.shape == (H, 3 * Hp) and b_qkv.shape == (1, 3 * Hp)

    x = hidden_states
    if x.dtype != w_qkv.dtype:           # only cast when needed (no extra pass)
        x = x.astype(w_qkv.dtype)
    itemsize = jnp.dtype(w_qkv.dtype).itemsize

    # Per-step VMEM estimate (double-buffered I/O + f32 intermediates).
    fixed_bytes = 2 * (H * 3 * Hp * itemsize + 3 * Hp * 4)       # w, b
    per_batch_bytes = (2 * S * H * itemsize                      # x
                       + 2 * Hp * 4                              # output
                       + S * 3 * Hp * 4                          # qkv
                       + 3 * S * Hp * 4                          # q/k/v
                       + 3 * S * S * 4)                          # scores/e/slack
    vmem_cap = _vmem_capacity_bytes()
    budget = max(vmem_cap // 3, 8 << 20)

    if batch_block is None:
        bB = _pick_batch_block(B, per_batch_bytes, fixed_bytes, budget,
                               min_steps=_num_tensorcores_per_chip())
    else:
        bB = batch_block
    assert B % bB == 0, "batch block must divide B"
    n_blocks = B // bB

    needed = fixed_bytes + bB * per_batch_bytes + (2 << 20)
    vmem_limit = int(min(vmem_cap * 9 // 10, max(2 * needed, 32 << 20)))

    out = pl.pallas_call(
        _temporal_attn_kernel,
        out_shape=jax.ShapeDtypeStruct((n_blocks, bB, Hp), jnp.float32),
        grid_spec=pltpu.PrefetchScalarGridSpec(
            num_scalar_prefetch=0,
            grid=(n_blocks,),
            in_specs=[
                # bB batch elements per grid step.
                pl.BlockSpec((bB, S, H), lambda b: (b, 0, 0)),
                # Grid-invariant fused weight / bias.
                # (Could be single-buffered via pipeline_mode=pl.Buffered(1);
                #  left at the default for portability — only ~H*3*Hp bytes.)
                pl.BlockSpec((H, 3 * Hp), lambda b: (0, 0)),
                pl.BlockSpec((1, 3 * Hp), lambda b: (0, 0)),
            ],
            # Lane-dense output block: (bB, Hp) with Hp a multiple of 128.
            out_specs=pl.BlockSpec((None, bB, Hp), lambda b: (b, 0, 0)),
        ),
        compiler_params=pltpu.CompilerParams(
            dimension_semantics=("parallel",),
            vmem_limit_bytes=vmem_limit),
    )(x, w_qkv, b_qkv)

    return out.reshape(B, Hp)[:, :H]


# ----------------------------------------------------------------------------
# Pure-JAX reference (mirrors the PyTorch forward)
# ----------------------------------------------------------------------------
def _reference(hidden_states, wq, bq, wk, bk, wv, bv):
    hp = lax.Precision.HIGHEST
    q = jnp.einsum("bsh,oh->bso", hidden_states, wq, precision=hp) + bq
    k = jnp.einsum("bsh,oh->bso", hidden_states, wk, precision=hp) + bk
    v = jnp.einsum("bsh,oh->bso", hidden_states, wv, precision=hp) + bv
    scores = jnp.einsum("bqh,bkh->bqk", q, k, precision=hp)
    scores = scores / (hidden_states.shape[-1] ** 0.5)
    attn = jax.nn.softmax(scores, axis=-1)
    weighted = jnp.einsum("bqk,bkh->bqh", attn, v, precision=hp)
    return jnp.sum(weighted, axis=1)


if __name__ == "__main__":
    B, S, H = 4, 8, 32   # batch, seq, hidden_dim (small toy shapes)

    key = jax.random.PRNGKey(0)
    k_x, k_wq, k_bq, k_wk, k_bk, k_wv, k_bv = jax.random.split(key, 7)

    hidden_states = jax.random.normal(k_x, (B, S, H), dtype=jnp.float32)
    # PyTorch nn.Linear layout: W is (out, in), b is (out,).
    init = 1.0 / (H ** 0.5)
    wq = jax.random.uniform(k_wq, (H, H), jnp.float32, -init, init)
    bq = jax.random.uniform(k_bq, (H,), jnp.float32, -init, init)
    wk = jax.random.uniform(k_wk, (H, H), jnp.float32, -init, init)
    bk = jax.random.uniform(k_bk, (H,), jnp.float32, -init, init)
    wv = jax.random.uniform(k_wv, (H, H), jnp.float32, -init, init)
    bv = jax.random.uniform(k_bv, (H,), jnp.float32, -init, init)

    # Prepared once per parameter update (not per forward call).
    # For production sizes on v5e/v6e/v7x pass matmul_dtype=jnp.bfloat16.
    w_qkv, b_qkv = prepare_qkv_params(wq, bq, wk, bk, wv, bv,
                                      matmul_dtype=jnp.float32)

    out = temporal_attention(hidden_states, w_qkv, b_qkv)
    out = jax.block_until_ready(out)

    ref = _reference(hidden_states, wq, bq, wk, bk, wv, bv)
    assert out.shape == (B, H)
    assert jnp.allclose(out, ref, atol=1e-3, rtol=1e-3), "mismatch vs reference"

    print("KERNEL_OK")
</pallas_src>

<mosaic_0001>
module attributes {stable_mosaic.version = 11 : i64} {
  func.func @_temporal_attn_kernel(%arg0: i32, %arg1: memref<4x8x32xf32, #tpu.memory_space<vmem>>, %arg2: memref<32x384xf32, #tpu.memory_space<vmem>>, %arg3: memref<1x384xf32, #tpu.memory_space<vmem>>, %arg4: memref<1x4x128xf32, #tpu.memory_space<vmem>>) attributes {dimension_semantics = [#tpu.dimension_semantics<parallel>], iteration_bounds = array<i64: 1>, scalar_prefetch = 0 : i64, scratch_operands = 0 : i64, tpu.core_type = #tpu.core_type<tc>, window_params = [{transform_indices = @transform_0, window_bounds = array<i64: 4, 8, 32>}, {pipeline_mode = #tpu.pipeline_mode<synchronous>, transform_indices = @transform_1, window_bounds = array<i64: 32, 384>}, {pipeline_mode = #tpu.pipeline_mode<synchronous>, transform_indices = @transform_2, window_bounds = array<i64: 1, 384>}, {transform_indices = @transform_3, window_bounds = array<i64: 1, 4, 128>}]} {
    %c0 = arith.constant 0 : index
    %c0_0 = arith.constant 0 : index
    %c0_1 = arith.constant 0 : index
    %0 = vector.load %arg1[%c0, %c0_0, %c0_1] : memref<4x8x32xf32, #tpu.memory_space<vmem>>, vector<4x8x32xf32>
    %1 = vector.shape_cast %0 : vector<4x8x32xf32> to vector<32x32xf32>
    %c0_2 = arith.constant 0 : index
    %c0_3 = arith.constant 0 : index
    %2 = vector.load %arg2[%c0_2, %c0_3] : memref<32x384xf32, #tpu.memory_space<vmem>>, vector<32x384xf32>
    %cst = arith.constant dense<0.000000e+00> : vector<32x384xf32>
    %3 = tpu.matmul %1, %2, %cst {dimension_numbers = #tpu.dot_dimension_numbers<[1], [0], [0], [1], [0, 0, 1, 1], [], []>} : vector<32x32xf32>, vector<32x384xf32>, vector<32x384xf32> -> vector<32x384xf32>
    %c0_4 = arith.constant 0 : index
    %c0_5 = arith.constant 0 : index
    %4 = vector.load %arg3[%c0_4, %c0_5] : memref<1x384xf32, #tpu.memory_space<vmem>>, vector<1x384xf32>
    %5 = vector.broadcast %4 : vector<1x384xf32> to vector<32x384xf32>
    %6 = arith.addf %3, %5 : vector<32x384xf32>
    %7 = vector.extract_strided_slice %6 {offsets = [0, 0], sizes = [32, 128], strides = [1, 1]} : vector<32x384xf32> to vector<32x128xf32>
    %8 = vector.shape_cast %7 : vector<32x128xf32> to vector<4x8x128xf32>
    %9 = vector.extract_strided_slice %6 {offsets = [0, 128], sizes = [32, 128], strides = [1, 1]} : vector<32x384xf32> to vector<32x128xf32>
    %10 = vector.shape_cast %9 : vector<32x128xf32> to vector<4x8x128xf32>
    %11 = vector.extract_strided_slice %6 {offsets = [0, 256], sizes = [32, 128], strides = [1, 1]} : vector<32x384xf32> to vector<32x128xf32>
    %12 = vector.shape_cast %11 : vector<32x128xf32> to vector<4x8x128xf32>
    %cst_6 = arith.constant dense<0.000000e+00> : vector<4x8x8xf32>
    %13 = tpu.matmul %8, %10, %cst_6 {dimension_numbers = #tpu.dot_dimension_numbers<[2], [2], [1], [1], [0, 0, 0, 1, 1, 1], [0], [0]>} : vector<4x8x128xf32>, vector<4x8x128xf32>, vector<4x8x8xf32> -> vector<4x8x8xf32>
    %cst_7 = arith.constant dense<0xFF800000> : vector<4x8xf32>
    %14 = vector.multi_reduction <maximumf>, %13, %cst_7 [2] : vector<4x8x8xf32> to vector<4x8xf32>
    %15 = vector.shape_cast %14 : vector<4x8xf32> to vector<4x8x1xf32>
    %16 = vector.broadcast %15 : vector<4x8x1xf32> to vector<4x8x8xf32>
    %17 = arith.subf %13, %16 : vector<4x8x8xf32>
    %18 = math.exp %17 : vector<4x8x8xf32>
    %cst_8 = arith.constant dense<0.000000e+00> : vector<4x8xf32>
    %19 = vector.multi_reduction <add>, %18, %cst_8 [2] : vector<4x8x8xf32> to vector<4x8xf32>
    %20 = vector.shape_cast %19 : vector<4x8xf32> to vector<4x8x1xf32>
    %cst_9 = arith.constant 1.000000e+00 : f32
    %21 = vector.broadcast %cst_9 : f32 to vector<4x8x1xf32>
    %22 = arith.divf %21, %20 : vector<4x8x1xf32>
    %23 = vector.shape_cast %22 : vector<4x8x1xf32> to vector<4x1x8xf32>
    %cst_10 = arith.constant dense<0.000000e+00> : vector<4x1x8xf32>
    %24 = tpu.matmul %23, %18, %cst_10 {dimension_numbers = #tpu.dot_dimension_numbers<[2], [1], [1], [2], [0, 0, 0, 1, 1, 2], [0], [0]>} : vector<4x1x8xf32>, vector<4x8x8xf32>, vector<4x1x8xf32> -> vector<4x1x8xf32>
    %cst_11 = arith.constant dense<0.000000e+00> : vector<4x1x128xf32>
    %25 = tpu.matmul %24, %12, %cst_11 {dimension_numbers = #tpu.dot_dimension_numbers<[2], [1], [1], [2], [0, 0, 0, 1, 1, 2], [0], [0]>} : vector<4x1x8xf32>, vector<4x8x128xf32>, vector<4x1x128xf32> -> vector<4x1x128xf32>
    %26 = vector.shape_cast %25 : vector<4x1x128xf32> to vector<4x128xf32>
    %c0_12 = arith.constant 0 : index
    %c0_13 = arith.constant 0 : index
    %c0_14 = arith.constant 0 : index
    %27 = vector.load %arg4[%c0_12, %c0_13, %c0_14] : memref<1x4x128xf32, #tpu.memory_space<vmem>>, vector<1x4x128xf32>
    %28 = vector.shape_cast %27 : vector<1x4x128xf32> to vector<4x128xf32>
    %29 = vector.shape_cast %26 : vector<4x128xf32> to vector<1x4x128xf32>
    tpu.vector_store %arg4[%c0_12, %c0_13, %c0_14], %29 {strides = array<i32>} : memref<1x4x128xf32, #tpu.memory_space<vmem>>, vector<1x4x128xf32>,
    return
  }
  func.func @transform_0(%arg0: i32) -> (i32, i32, i32) {
    %c0_i32 = arith.constant 0 : i32
    %c0_i32_0 = arith.constant 0 : i32
    %c0_i32_1 = arith.constant 0 : i32
    return %arg0, %c0_i32, %c0_i32_0 : i32, i32, i32
  }
  func.func @transform_1(%arg0: i32) -> (i32, i32) {
    %c0_i32 = arith.constant 0 : i32
    %c0_i32_0 = arith.constant 0 : i32
    %c0_i32_1 = arith.constant 0 : i32
    return %c0_i32, %c0_i32_0 : i32, i32
  }
  func.func @transform_2(%arg0: i32) -> (i32, i32) {
    %c0_i32 = arith.constant 0 : i32
    %c0_i32_0 = arith.constant 0 : i32
    %c0_i32_1 = arith.constant 0 : i32
    return %c0_i32, %c0_i32_0 : i32, i32
  }
  func.func @transform_3(%arg0: i32) -> (i32, i32, i32) {
    %c0_i32 = arith.constant 0 : i32
    %c0_i32_0 = arith.constant 0 : i32
    %c0_i32_1 = arith.constant 0 : i32
    return %arg0, %c0_i32, %c0_i32_0 : i32, i32, i32
  }
}

</mosaic_0001>

<llo_original>
// kernel: tpu_custom_call.1
$region0: #{tpu_custom_call.1}
  #allocation0 [shape = 'u32[]', space=smem, size = 0x4, offset = 0x4, fixed_abs, tag = 'smem constant byte address 0x4 - core index']
  #allocation1 [shape = 'u32[144,128]{1,0:T(1,128)}', space=vmem, size = 0x12000, scoped, tag = 'internal scratch']
  %s0 = inlined_call_operand.hbm [shape: f32[4,8,32], index: 0, kind: input, shape index: {}]
  %s1 = inlined_call_operand.hbm [shape: f32[32,384], index: 1, kind: input, shape index: {}]
  %s2 = inlined_call_operand.vmem [shape: f32[1,384], index: 2, kind: input, shape index: {}]
  %s3 = inlined_call_operand.hbm [shape: f32[1,4,128], index: 3, kind: output, shape index: {}]
  %s4 = sld [smem:[#allocation0]]
  $region30: #{tpu_custom_call.1} parent=0
    _
  %s6 = ssub.s32 1, %s4
  %s7 = scalar_select 0, %s6, %s4
  $region1: #{tpu_custom_call.1} parent=0
    #allocation2 [shape = 'u8[16384]{0}', space=vmem, size = 0x4000, scoped, tag = 'input window, operand 0, single buffered']
    #allocation3 [shape = 's32[1]{0}', space=sflag, size = 0x4, scoped, tag = 'scoped memory for tpu_custom_call.1']
    #allocation4 [shape = 's32[1]{0}', space=sflag, size = 0x4, scoped, tag = 'scoped memory for tpu_custom_call.1']
    #allocation5 [shape = 'u8[49152]{0}', space=vmem, size = 0xc000, scoped, tag = 'input window, operand 1, single buffered']
    #allocation6 [shape = 's32[1]{0}', space=sflag, size = 0x4, scoped, tag = 'scoped memory for tpu_custom_call.1']
    #allocation7 [shape = 'u8[2048]{0}', space=vmem, size = 0x800, scoped, tag = 'output window, operand 0, single buffered']
    %8 = vsyncpa [#allocation3], 0
    %9 = vsyncpa [#allocation6], 0
    %10 = vsyncpa [#allocation4], 0
    // Predicated region
    $region2: #{tpu_custom_call.1} parent=1 // pred_check
      _
    $region3: #{tpu_custom_call.1} parent=1 // pred_check_branch
      %12 = sbr.rel (0) target = $region5
    $region4: #{tpu_custom_call.1} parent=1 // pred_region
      %s14 = ssub.s32 512, 512
      %15 = vsyncadd [#allocation3], %s14
      %s16 = sshll.u32 [#allocation2], 4
      %s17 = int_to_ptr.vmem [resolvable:$true] %s16
      %22 = dma.hbm_to_vmem [thread:$0]  %s0, 512, %s17, [#allocation3], 128, 128, 8
    $region5: #{tpu_custom_call.1} parent=1 // pred_fallthru
      _
    // Predicated region
    $region6: #{tpu_custom_call.1} parent=1 // pred_check
      _
    $region7: #{tpu_custom_call.1} parent=1 // pred_check_branch
      %24 = sbr.rel (0) target = $region9
    $region8: #{tpu_custom_call.1} parent=1 // pred_region
      %s26 = ssub.s32 1536, 1536
      %27 = vsyncadd [#allocation6], %s26
      %s28 = sshll.u32 [#allocation5], 4
      %s29 = int_to_ptr.vmem [resolvable:$true] %s28
      %34 = dma.hbm_to_vmem [thread:$0]  %s1, 1536, %s29, [#allocation6], 384, 384, 24
    $region9: #{tpu_custom_call.1} parent=1 // pred_fallthru
      _
    // Predicated region
    $region10: #{tpu_custom_call.1} parent=1 // pred_check
      _
    $region11: #{tpu_custom_call.1} parent=1 // pred_check_branch
      %36 = sbr.rel (0) target = $region13
    $region12: #{tpu_custom_call.1} parent=1 // pred_region
      _
    $region13: #{tpu_custom_call.1} parent=1 // pred_fallthru
      _
    // Predicated region
    $region14: #{tpu_custom_call.1} parent=1 // pred_check
      _
    $region15: #{tpu_custom_call.1} parent=1 // pred_check_branch
      %38 = sbr.rel (0) target = $region17
    $region16: #{tpu_custom_call.1} parent=1 // pred_region
      %39 = dma.done [#allocation3], 512
    $region17: #{tpu_custom_call.1} parent=1 // pred_fallthru
      _
    // Predicated region
    $region18: #{tpu_custom_call.1} parent=1 // pred_check
      _
    $region19: #{tpu_custom_call.1} parent=1 // pred_check_branch
      %41 = sbr.rel (0) target = $region21
    $region20: #{tpu_custom_call.1} parent=1 // pred_region
      %42 = dma.done [#allocation6], 1536
    $region21: #{tpu_custom_call.1} parent=1 // pred_fallthru
      _
    %v43 = vld [vmem:[#allocation2] sm:$0xff]
    %v44 = vld [vmem:[#allocation2 + $0x8] sm:$0xff]
    %v45 = vld [vmem:[#allocation2 + $0x10] sm:$0xff]
    %v46 = vld [vmem:[#allocation2 + $0x18] sm:$0xff]
    %v47 = vld [vmem:[#allocation5] sm:$0xff]
    %v48 = vld [vmem:[#allocation5 + $0x8] sm:$0xff]
    %v49 = vld [vmem:[#allocation5 + $0x10] sm:$0xff]
    %v50 = vld [vmem:[#allocation5 + $0x18] sm:$0xff]
    %v51 = vld [vmem:[#allocation5 + $0x20] sm:$0xff]
    %v52 = vld [vmem:[#allocation5 + $0x28] sm:$0xff]
    %v53 = vld [vmem:[#allocation5 + $0x30] sm:$0xff]
    %v54 = vld [vmem:[#allocation5 + $0x38] sm:$0xff]
    %v55 = vld [vmem:[#allocation5 + $0x40] sm:$0xff]
    %v56 = vld [vmem:[#allocation5 + $0x48] sm:$0xff]
    %v57 = vld [vmem:[#allocation5 + $0x50] sm:$0xff]
    %v58 = vld [vmem:[#allocation5 + $0x58] sm:$0xff]
    %v59 = vld [vmem:[%s2] sm:$0x7]
    %v61 = vlaneseq
    %v62 = vshrl.u32 %v61, 7
    %v63 = vsub.s32 0, %v62
    %v64 = vrot.slane %v59, %v63
    %v65 = vlaneseq
    %v66 = vshrl.u32 %v65, 7
    %v67 = vsub.s32 1, %v66
    %v68 = vrot.slane %v59, %v67
    %v69 = vlaneseq
    %v70 = vshrl.u32 %v69, 7
    %v71 = vsub.s32 2, %v70
    %v72 = vrot.slane %v59, %v71
    %vm76 = vcmask 261120
    %v78 = vsel %vm76, %v43, 0
    %v81 = vsel %vm76, %v44, 0
    %v84 = vsel %vm76, %v45, 0
    %v87 = vsel %vm76, %v46, 0
    %89 = vmatprep.subr.mxu0 %v48
    %90 = vmatpush1.msra.mxu0 %v47
    %91 = vmatprep.subr.mxu0 %v51
    %92 = vmatpush1.msra.mxu0 %v50
    %93 = vmatprep.subr.mxu0 %v54
    %94 = vmatpush1.msra.mxu0 %v53
    %95 = vmatprep.subr.mxu0 %v57
    %96 = vmatpush1.msra.mxu0 %v56
    %97 = vmatprep.subr.mxu0 0.0
    %98 = vmatpush1.msra.mxu0 0.0
    %99 = vmatprep.subr.mxu0 0.0
    %100 = vmatpush1.msra.mxu0 0.0
    %101 = vmatprep.subr.mxu0 0.0
    %102 = vmatpush1.msra.mxu0 0.0
    %103 = vmatprep.subr.mxu0 0.0
    %104 = vmatpush1.msra.mxu0 0.0
    %105 = vmatprep.subr.mxu0 0.0
    %106 = vmatpush1.msra.mxu0 0.0
    %107 = vmatprep.subr.mxu0 0.0
    %108 = vmatpush1.msra.mxu0 0.0
    %109 = vmatprep.subr.mxu0 0.0
    %110 = vmatpush1.msra.mxu0 0.0
    %111 = vmatprep.subr.mxu0 0.0
    %112 = vmatpush1.msra.mxu0 0.0
    %113 = vmatprep.subr.mxu0 0.0
    %114 = vmatpush1.msra.mxu0 0.0
    %115 = vmatprep.subr.mxu0 0.0
    %116 = vmatpush1.msra.mxu0 0.0
    %117 = vmatprep.subr.mxu0 0.0
    %118 = vmatpush1.msra.mxu0 0.0
    %119 = vmatprep.subr.mxu0 0.0
    %120 = vmatpush1.msra.mxu0 0.0
    %121 = vmatprep.subr.mxu0 0.0
    %122 = vmatpush1.msra.mxu0 0.0
    %123 = vmatprep.subr.mxu0 0.0
    %124 = vmatpush1.msra.mxu0 0.0
    %125 = vmatprep.subr.mxu0 0.0
    %126 = vmatpush1.msra.mxu0 0.0
    %127 = vmatprep.subr.mxu0 0.0
    %128 = vmatpush1.msra.mxu0 0.0
    %129 = vmatprep.subr.mxu0 0.0
    %130 = vmatpush1.msra.mxu0 0.0
    %131 = vmatprep.subr.mxu0 0.0
    %132 = vmatpush1.msra.mxu0 0.0
    %133 = vmatprep.subr.mxu0 0.0
    %134 = vmatpush1.msra.mxu0 0.0
    %135 = vmatprep.subr.mxu0 0.0
    %136 = vmatpush1.msra.mxu0 0.0
    %137 = vmatprep.subr.mxu0 0.0
    %138 = vmatpush1.msra.mxu0 0.0
    %139 = vmatprep.subr.mxu0 0.0
    %140 = vmatpush1.msra.mxu0 0.0
    %141 = vmatprep.subr.mxu0 0.0
    %142 = vmatpush1.msra.mxu0 0.0
    %143 = vmatprep.subr.mxu0 0.0
    %144 = vmatpush1.msra.mxu0 0.0
    %145 = vmatprep.subr.mxu0 0.0
    %146 = vmatpush1.msra.mxu0 0.0
    %147 = vmatprep.subr.mxu0 0.0
    %148 = vmatpush1.msra.mxu0 0.0
    %149 = vmatprep.subr.mxu0 0.0
    %150 = vmatpush1.msra.mxu0 0.0
    %151 = vmatprep.subr.mxu0 0.0
    %152 = vmatpush1.msra.mxu0 0.0
    %153 = vmatprep.mubr.f32.mxu0 0.0
    %154 = vmatmul.mubr.f32.gmra.mrb[0].mxu0 %v78
    %v155 = vpop.f32.mrb[0].mxu0
    %v156 = vadd.f32 %v64, %v155
    %v157 = vpop.f32.mrb[0].mxu0
    %v158 = vadd.f32 %v68, %v157
    %159 = vmatprep.mubr.f32.mxu0 0.0
    %160 = vmatmul.mubr.f32.gmra.mrb[0].mxu0 %v81
    %v161 = vpop.f32.mrb[0].mxu0
    %v162 = vadd.f32 %v64, %v161
    %v163 = vpop.f32.mrb[0].mxu0
    %v164 = vadd.f32 %v68, %v163
    %165 = vmatprep.mubr.f32.mxu0 0.0
    %166 = vmatmul.mubr.f32.gmra.mrb[0].mxu0 %v84
    %v167 = vpop.f32.mrb[0].mxu0
    %v168 = vadd.f32 %v64, %v167
    %v169 = vpop.f32.mrb[0].mxu0
    %v170 = vadd.f32 %v68, %v169
    %171 = vmatprep.mubr.f32.mxu0 0.0
    %172 = vmatmul.mubr.f32.gmra.mrb[0].mxu0 %v87
    %v173 = vpop.f32.mrb[0].mxu0
    %v174 = vadd.f32 %v64, %v173
    %v175 = vpop.f32.mrb[0].mxu0
    %v176 = vadd.f32 %v68, %v175
    %177 = vdwg.mxu0
    %178 = vmatprep.subr.mxu0 0.0
    %179 = vmatpush1.msra.mxu0 %v49
    %180 = vmatprep.subr.mxu0 0.0
    %181 = vmatpush1.msra.mxu0 %v52
    %182 = vmatprep.subr.mxu0 0.0
    %183 = vmatpush1.msra.mxu0 %v55
    %184 = vmatprep.subr.mxu0 0.0
    %185 = vmatpush1.msra.mxu0 %v58
    %186 = vmatprep.subr.mxu0 0.0
    %187 = vmatpush1.msra.mxu0 0.0
    %188 = vmatprep.subr.mxu0 0.0
    %189 = vmatpush1.msra.mxu0 0.0
    %190 = vmatprep.subr.mxu0 0.0
    %191 = vmatpush1.msra.mxu0 0.0
    %192 = vmatprep.subr.mxu0 0.0
    %193 = vmatpush1.msra.mxu0 0.0
    %194 = vmatprep.subr.mxu0 0.0
    %195 = vmatpush1.msra.mxu0 0.0
    %196 = vmatprep.subr.mxu0 0.0
    %197 = vmatpush1.msra.mxu0 0.0
    %198 = vmatprep.subr.mxu0 0.0
    %199 = vmatpush1.msra.mxu0 0.0
    %200 = vmatprep.subr.mxu0 0.0
    %201 = vmatpush1.msra.mxu0 0.0
    %202 = vmatprep.subr.mxu0 0.0
    %203 = vmatpush1.msra.mxu0 0.0
    %204 = vmatprep.subr.mxu0 0.0
    %205 = vmatpush1.msra.mxu0 0.0
    %206 = vmatprep.subr.mxu0 0.0
    %207 = vmatpush1.msra.mxu0 0.0
    %208 = vmatprep.subr.mxu0 0.0
    %209 = vmatpush1.msra.mxu0 0.0
    %210 = vmatprep.subr.mxu0 0.0
    %211 = vmatpush1.msra.mxu0 0.0
    %212 = vmatprep.subr.mxu0 0.0
    %213 = vmatpush1.msra.mxu0 0.0
    %214 = vmatprep.subr.mxu0 0.0
    %215 = vmatpush1.msra.mxu0 0.0
    %216 = vmatprep.subr.mxu0 0.0
    %217 = vmatpush1.msra.mxu0 0.0
    %218 = vmatprep.subr.mxu0 0.0
    %219 = vmatpush1.msra.mxu0 0.0
    %220 = vmatprep.subr.mxu0 0.0
    %221 = vmatpush1.msra.mxu0 0.0
    %222 = vmatprep.subr.mxu0 0.0
    %223 = vmatpush1.msra.mxu0 0.0
    %224 = vmatprep.subr.mxu0 0.0
    %225 = vmatpush1.msra.mxu0 0.0
    %226 = vmatprep.subr.mxu0 0.0
    %227 = vmatpush1.msra.mxu0 0.0
    %228 = vmatprep.subr.mxu0 0.0
    %229 = vmatpush1.msra.mxu0 0.0
    %230 = vmatprep.subr.mxu0 0.0
    %231 = vmatpush1.msra.mxu0 0.0
    %232 = vmatprep.subr.mxu0 0.0
    %233 = vmatpush1.msra.mxu0 0.0
    %234 = vmatprep.subr.mxu0 0.0
    %235 = vmatpush1.msra.mxu0 0.0
    %236 = vmatprep.subr.mxu0 0.0
    %237 = vmatpush1.msra.mxu0 0.0
    %238 = vmatprep.subr.mxu0 0.0
    %239 = vmatpush1.msra.mxu0 0.0
    %240 = vmatprep.subr.mxu0 0.0
    %241 = vmatpush1.msra.mxu0 0.0
    %242 = vmatprep.mubr.f32.mxu0 0.0
    %243 = vmatmul.mubr.f32.gmra.mrb[0].mxu0 %v78
    %v244 = vpop.f32.mrb[0].mxu0
    %v245 = vadd.f32 %v72, %v244
    %v246 = vpop.f32.mrb[0].mxu0
    %247 = vmatprep.mubr.f32.mxu0 0.0
    %248 = vmatmul.mubr.f32.gmra.mrb[0].mxu0 %v81
    %v249 = vpop.f32.mrb[0].mxu0
    %v250 = vadd.f32 %v72, %v249
    %v251 = vpop.f32.mrb[0].mxu0
    %252 = vmatprep.mubr.f32.mxu0 0.0
    %253 = vmatmul.mubr.f32.gmra.mrb[0].mxu0 %v84
    %v254 = vpop.f32.mrb[0].mxu0
    %v255 = vadd.f32 %v72, %v254
    %v256 = vpop.f32.mrb[0].mxu0
    %257 = vmatprep.mubr.f32.mxu0 0.0
    %258 = vmatmul.mubr.f32.gmra.mrb[0].mxu0 %v87
    %v259 = vpop.f32.mrb[0].mxu0
    %v260 = vadd.f32 %v72, %v259
    %v261 = vpop.f32.mrb[0].mxu0
    %262 = vdwg.mxu0
    %263 = vmatprep.subr.mxu0 0.0
    %264 = vmatpush1.xpose.msra.mxu0 %v158
    %265 = vmatprep.subr.mxu0 0.0
    %266 = vmatpush1.xpose.msra.mxu0 0.0
    %267 = vmatprep.subr.mxu0 0.0
    %268 = vmatpush1.xpose.msra.mxu0 0.0
    %269 = vmatprep.subr.mxu0 0.0
    %270 = vmatpush1.xpose.msra.mxu0 0.0
    %271 = vmatprep.subr.mxu0 0.0
    %272 = vmatpush1.xpose.msra.mxu0 0.0
    %273 = vmatprep.subr.mxu0 0.0
    %274 = vmatpush1.xpose.msra.mxu0 0.0
    %275 = vmatprep.subr.mxu0 0.0
    %276 = vmatpush1.xpose.msra.mxu0 0.0
    %277 = vmatprep.subr.mxu0 0.0
    %278 = vmatpush1.xpose.msra.mxu0 0.0
    %279 = vmatprep.subr.mxu0 0.0
    %280 = vmatpush1.xpose.msra.mxu0 0.0
    %281 = vmatprep.subr.mxu0 0.0
    %282 = vmatpush1.xpose.msra.mxu0 0.0
    %283 = vmatprep.subr.mxu0 0.0
    %284 = vmatpush1.xpose.msra.mxu0 0.0
    %285 = vmatprep.subr.mxu0 0.0
    %286 = vmatpush1.xpose.msra.mxu0 0.0
    %287 = vmatprep.subr.mxu0 0.0
    %288 = vmatpush1.xpose.msra.mxu0 0.0
    %289 = vmatprep.subr.mxu0 0.0
    %290 = vmatpush1.xpose.msra.mxu0 0.0
    %291 = vmatprep.subr.mxu0 0.0
    %292 = vmatpush1.xpose.msra.mxu0 0.0
    %293 = vmatprep.subr.mxu0 0.0
    %294 = vmatpush1.xpose.msra.mxu0 0.0
    %295 = vmatprep.subr.mxu0 0.0
    %296 = vmatpush1.xpose.msra.mxu0 0.0
    %297 = vmatprep.subr.mxu0 0.0
    %298 = vmatpush1.xpose.msra.mxu0 0.0
    %299 = vmatprep.subr.mxu0 0.0
    %300 = vmatpush1.xpose.msra.mxu0 0.0
    %301 = vmatprep.subr.mxu0 0.0
    %302 = vmatpush1.xpose.msra.mxu0 0.0
    %303 = vmatprep.subr.mxu0 0.0
    %304 = vmatpush1.xpose.msra.mxu0 0.0
    %305 = vmatprep.subr.mxu0 0.0
    %306 = vmatpush1.xpose.msra.mxu0 0.0
    %307 = vmatprep.subr.mxu0 0.0
    %308 = vmatpush1.xpose.msra.mxu0 0.0
    %309 = vmatprep.subr.mxu0 0.0
    %310 = vmatpush1.xpose.msra.mxu0 0.0
    %311 = vmatprep.subr.mxu0 0.0
    %312 = vmatpush1.xpose.msra.mxu0 0.0
    %313 = vmatprep.subr.mxu0 0.0
    %314 = vmatpush1.xpose.msra.mxu0 0.0
    %315 = vmatprep.subr.mxu0 0.0
    %316 = vmatpush1.xpose.msra.mxu0 0.0
    %317 = vmatprep.subr.mxu0 0.0
    %318 = vmatpush1.xpose.msra.mxu0 0.0
    %319 = vmatprep.subr.mxu0 0.0
    %320 = vmatpush1.xpose.msra.mxu0 0.0
    %321 = vmatprep.subr.mxu0 0.0
    %322 = vmatpush1.xpose.msra.mxu0 0.0
    %323 = vmatprep.subr.mxu0 0.0
    %324 = vmatpush1.xpose.msra.mxu0 0.0
    %325 = vmatprep.subr.mxu0 0.0
    %326 = vmatpush1.xpose.msra.mxu0 0.0
    %327 = vmatprep.mubr.f32.mxu0 0.0
    %328 = vmatmul.mubr.f32.gmra.mrb[0].mxu0 %v156
    %v329 = vpop.f32.mrb[0].mxu0
    %v330 = vadd.f32 0.0, %v329
    %v331 = vpop.f32.mrb[0].mxu0
    %332 = vdwg.mxu0
    %333 = vmatprep.subr.mxu0 0.0
    %334 = vmatpush1.xpose.msra.mxu0 %v164
    %335 = vmatprep.subr.mxu0 0.0
    %336 = vmatpush1.xpose.msra.mxu0 0.0
    %337 = vmatprep.subr.mxu0 0.0
    %338 = vmatpush1.xpose.msra.mxu0 0.0
    %339 = vmatprep.subr.mxu0 0.0
    %340 = vmatpush1.xpose.msra.mxu0 0.0
    %341 = vmatprep.subr.mxu0 0.0
    %342 = vmatpush1.xpose.msra.mxu0 0.0
    %343 = vmatprep.subr.mxu0 0.0
    %344 = vmatpush1.xpose.msra.mxu0 0.0
    %345 = vmatprep.subr.mxu0 0.0
    %346 = vmatpush1.xpose.msra.mxu0 0.0
    %347 = vmatprep.subr.mxu0 0.0
    %348 = vmatpush1.xpose.msra.mxu0 0.0
    %349 = vmatprep.subr.mxu0 0.0
    %350 = vmatpush1.xpose.msra.mxu0 0.0
    %351 = vmatprep.subr.mxu0 0.0
    %352 = vmatpush1.xpose.msra.mxu0 0.0
    %353 = vmatprep.subr.mxu0 0.0
    %354 = vmatpush1.xpose.msra.mxu0 0.0
    %355 = vmatprep.subr.mxu0 0.0
    %356 = vmatpush1.xpose.msra.mxu0 0.0
    %357 = vmatprep.subr.mxu0 0.0
    %358 = vmatpush1.xpose.msra.mxu0 0.0
    %359 = vmatprep.subr.mxu0 0.0
    %360 = vmatpush1.xpose.msra.mxu0 0.0
    %361 = vmatprep.subr.mxu0 0.0
    %362 = vmatpush1.xpose.msra.mxu0 0.0
    %363 = vmatprep.subr.mxu0 0.0
    %364 = vmatpush1.xpose.msra.mxu0 0.0
    %365 = vmatprep.subr.mxu0 0.0
    %366 = vmatpush1.xpose.msra.mxu0 0.0
    %367 = vmatprep.subr.mxu0 0.0
    %368 = vmatpush1.xpose.msra.mxu0 0.0
    %369 = vmatprep.subr.mxu0 0.0
    %370 = vmatpush1.xpose.msra.mxu0 0.0
    %371 = vmatprep.subr.mxu0 0.0
    %372 = vmatpush1.xpose.msra.mxu0 0.0
    %373 = vmatprep.subr.mxu0 0.0
    %374 = vmatpush1.xpose.msra.mxu0 0.0
    %375 = vmatprep.subr.mxu0 0.0
    %376 = vmatpush1.xpose.msra.mxu0 0.0
    %377 = vmatprep.subr.mxu0 0.0
    %378 = vmatpush1.xpose.msra.mxu0 0.0
    %379 = vmatprep.subr.mxu0 0.0
    %380 = vmatpush1.xpose.msra.mxu0 0.0
    %381 = vmatprep.subr.mxu0 0.0
    %382 = vmatpush1.xpose.msra.mxu0 0.0
    %383 = vmatprep.subr.mxu0 0.0
    %384 = vmatpush1.xpose.msra.mxu0 0.0
    %385 = vmatprep.subr.mxu0 0.0
    %386 = vmatpush1.xpose.msra.mxu0 0.0
    %387 = vmatprep.subr.mxu0 0.0
    %388 = vmatpush1.xpose.msra.mxu0 0.0
    %389 = vmatprep.subr.mxu0 0.0
    %390 = vmatpush1.xpose.msra.mxu0 0.0
    %391 = vmatprep.subr.mxu0 0.0
    %392 = vmatpush1.xpose.msra.mxu0 0.0
    %393 = vmatprep.subr.mxu0 0.0
    %394 = vmatpush1.xpose.msra.mxu0 0.0
    %395 = vmatprep.subr.mxu0 0.0
    %396 = vmatpush1.xpose.msra.mxu0 0.0
    %397 = vmatprep.mubr.f32.mxu0 0.0
    %398 = vmatmul.mubr.f32.gmra.mrb[0].mxu0 %v162
    %v399 = vpop.f32.mrb[0].mxu0
    %v400 = vadd.f32 0.0, %v399
    %v401 = vpop.f32.mrb[0].mxu0
    %402 = vdwg.mxu0
    %403 = vmatprep.subr.mxu0 0.0
    %404 = vmatpush1.xpose.msra.mxu0 %v170
    %405 = vmatprep.subr.mxu0 0.0
    %406 = vmatpush1.xpose.msra.mxu0 0.0
    %407 = vmatprep.subr.mxu0 0.0
    %408 = vmatpush1.xpose.msra.mxu0 0.0
    %409 = vmatprep.subr.mxu0 0.0
    %410 = vmatpush1.xpose.msra.mxu0 0.0
    %411 = vmatprep.subr.mxu0 0.0
    %412 = vmatpush1.xpose.msra.mxu0 0.0
    %413 = vmatprep.subr.mxu0 0.0
    %414 = vmatpush1.xpose.msra.mxu0 0.0
    %415 = vmatprep.subr.mxu0 0.0
    %416 = vmatpush1.xpose.msra.mxu0 0.0
    %417 = vmatprep.subr.mxu0 0.0
    %418 = vmatpush1.xpose.msra.mxu0 0.0
    %419 = vmatprep.subr.mxu0 0.0
    %420 = vmatpush1.xpose.msra.mxu0 0.0
    %421 = vmatprep.subr.mxu0 0.0
    %422 = vmatpush1.xpose.msra.mxu0 0.0
    %423 = vmatprep.subr.mxu0 0.0
    %424 = vmatpush1.xpose.msra.mxu0 0.0
    %425 = vmatprep.subr.mxu0 0.0
    %426 = vmatpush1.xpose.msra.mxu0 0.0
    %427 = vmatprep.subr.mxu0 0.0
    %428 = vmatpush1.xpose.msra.mxu0 0.0
    %429 = vmatprep.subr.mxu0 0.0
    %430 = vmatpush1.xpose.msra.mxu0 0.0
    %431 = vmatprep.subr.mxu0 0.0
    %432 = vmatpush1.xpose.msra.mxu0 0.0
    %433 = vmatprep.subr.mxu0 0.0
    %434 = vmatpush1.xpose.msra.mxu0 0.0
    %435 = vmatprep.subr.mxu0 0.0
    %436 = vmatpush1.xpose.msra.mxu0 0.0
    %437 = vmatprep.subr.mxu0 0.0
    %438 = vmatpush1.xpose.msra.mxu0 0.0
    %439 = vmatprep.subr.mxu0 0.0
    %440 = vmatpush1.xpose.msra.mxu0 0.0
    %441 = vmatprep.subr.mxu0 0.0
    %442 = vmatpush1.xpose.msra.mxu0 0.0
    %443 = vmatprep.subr.mxu0 0.0
    %444 = vmatpush1.xpose.msra.mxu0 0.0
    %445 = vmatprep.subr.mxu0 0.0
    %446 = vmatpush1.xpose.msra.mxu0 0.0
    %447 = vmatprep.subr.mxu0 0.0
    %448 = vmatpush1.xpose.msra.mxu0 0.0
    %449 = vmatprep.subr.mxu0 0.0
    %450 = vmatpush1.xpose.msra.mxu0 0.0
    %451 = vmatprep.subr.mxu0 0.0
    %452 = vmatpush1.xpose.msra.mxu0 0.0
    %453 = vmatprep.subr.mxu0 0.0
    %454 = vmatpush1.xpose.msra.mxu0 0.0
    %455 = vmatprep.subr.mxu0 0.0
    %456 = vmatpush1.xpose.msra.mxu0 0.0
    %457 = vmatprep.subr.mxu0 0.0
    %458 = vmatpush1.xpose.msra.mxu0 0.0
    %459 = vmatprep.subr.mxu0 0.0
    %460 = vmatpush1.xpose.msra.mxu0 0.0
    %461 = vmatprep.subr.mxu0 0.0
    %462 = vmatpush1.xpose.msra.mxu0 0.0
    %463 = vmatprep.subr.mxu0 0.0
    %464 = vmatpush1.xpose.msra.mxu0 0.0
    %465 = vmatprep.subr.mxu0 0.0
    %466 = vmatpush1.xpose.msra.mxu0 0.0
    %467 = vmatprep.mubr.f32.mxu0 0.0
    %468 = vmatmul.mubr.f32.gmra.mrb[0].mxu0 %v168
    %v469 = vpop.f32.mrb[0].mxu0
    %v470 = vadd.f32 0.0, %v469
    %v471 = vpop.f32.mrb[0].mxu0
    %472 = vdwg.mxu0
    %473 = vmatprep.subr.mxu0 0.0
    %474 = vmatpush1.xpose.msra.mxu0 %v176
    %475 = vmatprep.subr.mxu0 0.0
    %476 = vmatpush1.xpose.msra.mxu0 0.0
    %477 = vmatprep.subr.mxu0 0.0
    %478 = vmatpush1.xpose.msra.mxu0 0.0
    %479 = vmatprep.subr.mxu0 0.0
    %480 = vmatpush1.xpose.msra.mxu0 0.0
    %481 = vmatprep.subr.mxu0 0.0
    %482 = vmatpush1.xpose.msra.mxu0 0.0
    %483 = vmatprep.subr.mxu0 0.0
    %484 = vmatpush1.xpose.msra.mxu0 0.0
    %485 = vmatprep.subr.mxu0 0.0
    %486 = vmatpush1.xpose.msra.mxu0 0.0
    %487 = vmatprep.subr.mxu0 0.0
    %488 = vmatpush1.xpose.msra.mxu0 0.0
    %489 = vmatprep.subr.mxu0 0.0
    %490 = vmatpush1.xpose.msra.mxu0 0.0
    %491 = vmatprep.subr.mxu0 0.0
    %492 = vmatpush1.xpose.msra.mxu0 0.0
    %493 = vmatprep.subr.mxu0 0.0
    %494 = vmatpush1.xpose.msra.mxu0 0.0
    %495 = vmatprep.subr.mxu0 0.0
    %496 = vmatpush1.xpose.msra.mxu0 0.0
    %497 = vmatprep.subr.mxu0 0.0
    %498 = vmatpush1.xpose.msra.mxu0 0.0
    %499 = vmatprep.subr.mxu0 0.0
    %500 = vmatpush1.xpose.msra.mxu0 0.0
    %501 = vmatprep.subr.mxu0 0.0
    %502 = vmatpush1.xpose.msra.mxu0 0.0
    %503 = vmatprep.subr.mxu0 0.0
    %504 = vmatpush1.xpose.msra.mxu0 0.0
    %505 = vmatprep.subr.mxu0 0.0
    %506 = vmatpush1.xpose.msra.mxu0 0.0
    %507 = vmatprep.subr.mxu0 0.0
    %508 = vmatpush1.xpose.msra.mxu0 0.0
    %509 = vmatprep.subr.mxu0 0.0
    %510 = vmatpush1.xpose.msra.mxu0 0.0
    %511 = vmatprep.subr.mxu0 0.0
    %512 = vmatpush1.xpose.msra.mxu0 0.0
    %513 = vmatprep.subr.mxu0 0.0
    %514 = vmatpush1.xpose.msra.mxu0 0.0
    %515 = vmatprep.subr.mxu0 0.0
    %516 = vmatpush1.xpose.msra.mxu0 0.0
    %517 = vmatprep.subr.mxu0 0.0
    %518 = vmatpush1.xpose.msra.mxu0 0.0
    %519 = vmatprep.subr.mxu0 0.0
    %520 = vmatpush1.xpose.msra.mxu0 0.0
    %521 = vmatprep.subr.mxu0 0.0
    %522 = vmatpush1.xpose.msra.mxu0 0.0
    %523 = vmatprep.subr.mxu0 0.0
    %524 = vmatpush1.xpose.msra.mxu0 0.0
    %525 = vmatprep.subr.mxu0 0.0
    %526 = vmatpush1.xpose.msra.mxu0 0.0
    %527 = vmatprep.subr.mxu0 0.0
    %528 = vmatpush1.xpose.msra.mxu0 0.0
    %529 = vmatprep.subr.mxu0 0.0
    %530 = vmatpush1.xpose.msra.mxu0 0.0
    %531 = vmatprep.subr.mxu0 0.0
    %532 = vmatpush1.xpose.msra.mxu0 0.0
    %533 = vmatprep.subr.mxu0 0.0
    %534 = vmatpush1.xpose.msra.mxu0 0.0
    %535 = vmatprep.subr.mxu0 0.0
    %536 = vmatpush1.xpose.msra.mxu0 0.0
    %537 = vmatprep.mubr.f32.mxu0 0.0
    %538 = vmatmul.mubr.f32.gmra.mrb[0].mxu0 %v174
    %v539 = vpop.f32.mrb[0].mxu0
    %v540 = vadd.f32 0.0, %v539
    %v541 = vpop.f32.mrb[0].mxu0
    %542 = vdwg.mxu0
    %vm543 = vcmask 64512
    %v544 = vsel %vm543, %v330, -inf
    %545 = vmax.xlane.f32.xlu0 %v544
    %v546 = vpop.xlane.xlu0 %545
    %v547 = vsel %vm543, %v400, -inf
    %548 = vmax.xlane.f32.xlu0 %v547
    %v549 = vpop.xlane.xlu0 %548
    %v550 = vsel %vm543, %v470, -inf
    %551 = vmax.xlane.f32.xlu0 %v550
    %v552 = vpop.xlane.xlu0 %551
    %v553 = vsel %vm543, %v540, -inf
    %554 = vmax.xlane.f32.xlu0 %v553
    %v555 = vpop.xlane.xlu0 %554
    %v556 = vsub.f32 %v330, %v546
    %v557 = vsub.f32 %v400, %v549
    %v558 = vsub.f32 %v470, %v552
    %v559 = vsub.f32 %v540, %v555
    %v560 = vmul.f32 %v556, 1.442695
    %v561 = vpow.pop %v560
    %v562 = vmul.f32 %v557, 1.442695
    %v563 = vpow.pop %v562
    %v564 = vmul.f32 %v558, 1.442695
    %v565 = vpow.pop %v564
    %v566 = vmul.f32 %v559, 1.442695
    %v567 = vpow.pop %v566
    %v568 = vsel %vm543, %v561, 0.0
    %569 = vadd.xlane.f32.xlu0 %v568
    %v570 = vpop.xlane.xlu0 %569
    %v571 = vsel %vm543, %v563, 0.0
    %572 = vadd.xlane.f32.xlu0 %v571
    %v573 = vpop.xlane.xlu0 %572
    %v574 = vsel %vm543, %v565, 0.0
    %575 = vadd.xlane.f32.xlu0 %v574
    %v576 = vpop.xlane.xlu0 %575
    %v577 = vsel %vm543, %v567, 0.0
    %578 = vadd.xlane.f32.xlu0 %v577
    %v579 = vpop.xlane.xlu0 %578
    %v580 = vrcp.pop %v570
    %v581 = vmul.f32 1.0, %v580
    %v582 = vrcp.pop %v573
    %v583 = vmul.f32 1.0, %v582
    %v584 = vrcp.pop %v576
    %v585 = vmul.f32 1.0, %v584
    %v586 = vrcp.pop %v579
    %v587 = vmul.f32 1.0, %v586
    %v589 = vlaneseq
    %v590 = vand.u32 %v589, 127
    %v591 = vlaneseq
    %v592 = vshrl.u32 %v591, 7
    %v593 = vsub.s32 %v590, %v592
    %v594 = vrot.slane %v581, %v593
    %v595 = vsel %vm543, %v594, 0
    %597 = vmatprep.subr.mxu0 0.0
    %598 = vmatpush1.msra.mxu0 %v561
    %599 = vmatprep.subr.mxu0 0.0
    %600 = vmatpush1.msra.mxu0 0.0
    %601 = vmatprep.subr.mxu0 0.0
    %602 = vmatpush1.msra.mxu0 0.0
    %603 = vmatprep.subr.mxu0 0.0
    %604 = vmatpush1.msra.mxu0 0.0
    %605 = vmatprep.subr.mxu0 0.0
    %606 = vmatpush1.msra.mxu0 0.0
    %607 = vmatprep.subr.mxu0 0.0
    %608 = vmatpush1.msra.mxu0 0.0
    %609 = vmatprep.subr.mxu0 0.0
    %610 = vmatpush1.msra.mxu0 0.0
    %611 = vmatprep.subr.mxu0 0.0
    %612 = vmatpush1.msra.mxu0 0.0
    %613 = vmatprep.subr.mxu0 0.0
    %614 = vmatpush1.msra.mxu0 0.0
    %615 = vmatprep.subr.mxu0 0.0
    %616 = vmatpush1.msra.mxu0 0.0
    %617 = vmatprep.subr.mxu0 0.0
    %618 = vmatpush1.msra.mxu0 0.0
    %619 = vmatprep.subr.mxu0 0.0
    %620 = vmatpush1.msra.mxu0 0.0
    %621 = vmatprep.subr.mxu0 0.0
    %622 = vmatpush1.msra.mxu0 0.0
    %623 = vmatprep.subr.mxu0 0.0
    %624 = vmatpush1.msra.mxu0 0.0
    %625 = vmatprep.subr.mxu0 0.0
    %626 = vmatpush1.msra.mxu0 0.0
    %627 = vmatprep.subr.mxu0 0.0
    %628 = vmatpush1.msra.mxu0 0.0
    %629 = vmatprep.subr.mxu0 0.0
    %630 = vmatpush1.msra.mxu0 0.0
    %631 = vmatprep.subr.mxu0 0.0
    %632 = vmatpush1.msra.mxu0 0.0
    %633 = vmatprep.subr.mxu0 0.0
    %634 = vmatpush1.msra.mxu0 0.0
    %635 = vmatprep.subr.mxu0 0.0
    %636 = vmatpush1.msra.mxu0 0.0
    %637 = vmatprep.subr.mxu0 0.0
    %638 = vmatpush1.msra.mxu0 0.0
    %639 = vmatprep.subr.mxu0 0.0
    %640 = vmatpush1.msra.mxu0 0.0
    %641 = vmatprep.subr.mxu0 0.0
    %642 = vmatpush1.msra.mxu0 0.0
    %643 = vmatprep.subr.mxu0 0.0
    %644 = vmatpush1.msra.mxu0 0.0
    %645 = vmatprep.subr.mxu0 0.0
    %646 = vmatpush1.msra.mxu0 0.0
    %647 = vmatprep.subr.mxu0 0.0
    %648 = vmatpush1.msra.mxu0 0.0
    %649 = vmatprep.subr.mxu0 0.0
    %650 = vmatpush1.msra.mxu0 0.0
    %651 = vmatprep.subr.mxu0 0.0
    %652 = vmatpush1.msra.mxu0 0.0
    %653 = vmatprep.subr.mxu0 0.0
    %654 = vmatpush1.msra.mxu0 0.0
    %655 = vmatprep.subr.mxu0 0.0
    %656 = vmatpush1.msra.mxu0 0.0
    %657 = vmatprep.subr.mxu0 0.0
    %658 = vmatpush1.msra.mxu0 0.0
    %659 = vmatprep.subr.mxu0 0.0
    %660 = vmatpush1.msra.mxu0 0.0
    %661 = vmatprep.mubr.f32.mxu0 0.0
    %662 = vmatmul.mubr.f32.gmra.mrb[0].mxu0 %v595
    %v663 = vpop.f32.mrb[0].mxu0
    %v664 = vadd.f32 0.0, %v663
    %v665 = vpop.f32.mrb[0].mxu0
    %666 = vdwg.mxu0
    %v668 = vlaneseq
    %v669 = vshrl.u32 %v668, 7
    %v670 = vsub.s32 %v590, %v669
    %v671 = vrot.slane %v583, %v670
    %v672 = vsel %vm543, %v671, 0
    %674 = vmatprep.subr.mxu0 0.0
    %675 = vmatpush1.msra.mxu0 %v563
    %676 = vmatprep.subr.mxu0 0.0
    %677 = vmatpush1.msra.mxu0 0.0
    %678 = vmatprep.subr.mxu0 0.0
    %679 = vmatpush1.msra.mxu0 0.0
    %680 = vmatprep.subr.mxu0 0.0
    %681 = vmatpush1.msra.mxu0 0.0
    %682 = vmatprep.subr.mxu0 0.0
    %683 = vmatpush1.msra.mxu0 0.0
    %684 = vmatprep.subr.mxu0 0.0
    %685 = vmatpush1.msra.mxu0 0.0
    %686 = vmatprep.subr.mxu0 0.0
    %687 = vmatpush1.msra.mxu0 0.0
    %688 = vmatprep.subr.mxu0 0.0
    %689 = vmatpush1.msra.mxu0 0.0
    %690 = vmatprep.subr.mxu0 0.0
    %691 = vmatpush1.msra.mxu0 0.0
    %692 = vmatprep.subr.mxu0 0.0
    %693 = vmatpush1.msra.mxu0 0.0
    %694 = vmatprep.subr.mxu0 0.0
    %695 = vmatpush1.msra.mxu0 0.0
    %696 = vmatprep.subr.mxu0 0.0
    %697 = vmatpush1.msra.mxu0 0.0
    %698 = vmatprep.subr.mxu0 0.0
    %699 = vmatpush1.msra.mxu0 0.0
    %700 = vmatprep.subr.mxu0 0.0
    %701 = vmatpush1.msra.mxu0 0.0
    %702 = vmatprep.subr.mxu0 0.0
    %703 = vmatpush1.msra.mxu0 0.0
    %704 = vmatprep.subr.mxu0 0.0
    %705 = vmatpush1.msra.mxu0 0.0
    %706 = vmatprep.subr.mxu0 0.0
    %707 = vmatpush1.msra.mxu0 0.0
    %708 = vmatprep.subr.mxu0 0.0
    %709 = vmatpush1.msra.mxu0 0.0
    %710 = vmatprep.subr.mxu0 0.0
    %711 = vmatpush1.msra.mxu0 0.0
    %712 = vmatprep.subr.mxu0 0.0
    %713 = vmatpush1.msra.mxu0 0.0
    %714 = vmatprep.subr.mxu0 0.0
    %715 = vmatpush1.msra.mxu0 0.0
    %716 = vmatprep.subr.mxu0 0.0
    %717 = vmatpush1.msra.mxu0 0.0
    %718 = vmatprep.subr.mxu0 0.0
    %719 = vmatpush1.msra.mxu0 0.0
    %720 = vmatprep.subr.mxu0 0.0
    %721 = vmatpush1.msra.mxu0 0.0
    %722 = vmatprep.subr.mxu0 0.0
    %723 = vmatpush1.msra.mxu0 0.0
    %724 = vmatprep.subr.mxu0 0.0
    %725 = vmatpush1.msra.mxu0 0.0
    %726 = vmatprep.subr.mxu0 0.0
    %727 = vmatpush1.msra.mxu0 0.0
    %728 = vmatprep.subr.mxu0 0.0
    %729 = vmatpush1.msra.mxu0 0.0
    %730 = vmatprep.subr.mxu0 0.0
    %731 = vmatpush1.msra.mxu0 0.0
    %732 = vmatprep.subr.mxu0 0.0
    %733 = vmatpush1.msra.mxu0 0.0
    %734 = vmatprep.subr.mxu0 0.0
    %735 = vmatpush1.msra.mxu0 0.0
    %736 = vmatprep.subr.mxu0 0.0
    %737 = vmatpush1.msra.mxu0 0.0
    %738 = vmatprep.mubr.f32.mxu0 0.0
    %739 = vmatmul.mubr.f32.gmra.mrb[0].mxu0 %v672
    %v740 = vpop.f32.mrb[0].mxu0
    %v741 = vadd.f32 0.0, %v740
    %v742 = vpop.f32.mrb[0].mxu0
    %743 = vdwg.mxu0
    %v745 = vlaneseq
    %v746 = vshrl.u32 %v745, 7
    %v747 = vsub.s32 %v590, %v746
    %v748 = vrot.slane %v585, %v747
    %v749 = vsel %vm543, %v748, 0
    %751 = vmatprep.subr.mxu0 0.0
    %752 = vmatpush1.msra.mxu0 %v565
    %753 = vmatprep.subr.mxu0 0.0
    %754 = vmatpush1.msra.mxu0 0.0
    %755 = vmatprep.subr.mxu0 0.0
    %756 = vmatpush1.msra.mxu0 0.0
    %757 = vmatprep.subr.mxu0 0.0
    %758 = vmatpush1.msra.mxu0 0.0
    %759 = vmatprep.subr.mxu0 0.0
    %760 = vmatpush1.msra.mxu0 0.0
    %761 = vmatprep.subr.mxu0 0.0
    %762 = vmatpush1.msra.mxu0 0.0
    %763 = vmatprep.subr.mxu0 0.0
    %764 = vmatpush1.msra.mxu0 0.0
    %765 = vmatprep.subr.mxu0 0.0
    %766 = vmatpush1.msra.mxu0 0.0
    %767 = vmatprep.subr.mxu0 0.0
    %768 = vmatpush1.msra.mxu0 0.0
    %769 = vmatprep.subr.mxu0 0.0
    %770 = vmatpush1.msra.mxu0 0.0
    %771 = vmatprep.subr.mxu0 0.0
    %772 = vmatpush1.msra.mxu0 0.0
    %773 = vmatprep.subr.mxu0 0.0
    %774 = vmatpush1.msra.mxu0 0.0
    %775 = vmatprep.subr.mxu0 0.0
    %776 = vmatpush1.msra.mxu0 0.0
    %777 = vmatprep.subr.mxu0 0.0
    %778 = vmatpush1.msra.mxu0 0.0
    %779 = vmatprep.subr.mxu0 0.0
    %780 = vmatpush1.msra.mxu0 0.0
    %781 = vmatprep.subr.mxu0 0.0
    %782 = vmatpush1.msra.mxu0 0.0
    %783 = vmatprep.subr.mxu0 0.0
    %784 = vmatpush1.msra.mxu0 0.0
    %785 = vmatprep.subr.mxu0 0.0
    %786 = vmatpush1.msra.mxu0 0.0
    %787 = vmatprep.subr.mxu0 0.0
    %788 = vmatpush1.msra.mxu0 0.0
    %789 = vmatprep.subr.mxu0 0.0
    %790 = vmatpush1.msra.mxu0 0.0
    %791 = vmatprep.subr.mxu0 0.0
    %792 = vmatpush1.msra.mxu0 0.0
    %793 = vmatprep.subr.mxu0 0.0
    %794 = vmatpush1.msra.mxu0 0.0
    %795 = vmatprep.subr.mxu0 0.0
    %796 = vmatpush1.msra.mxu0 0.0
    %797 = vmatprep.subr.mxu0 0.0
    %798 = vmatpush1.msra.mxu0 0.0
    %799 = vmatprep.subr.mxu0 0.0
    %800 = vmatpush1.msra.mxu0 0.0
    %801 = vmatprep.subr.mxu0 0.0
    %802 = vmatpush1.msra.mxu0 0.0
    %803 = vmatprep.subr.mxu0 0.0
    %804 = vmatpush1.msra.mxu0 0.0
    %805 = vmatprep.subr.mxu0 0.0
    %806 = vmatpush1.msra.mxu0 0.0
    %807 = vmatprep.subr.mxu0 0.0
    %808 = vmatpush1.msra.mxu0 0.0
    %809 = vmatprep.subr.mxu0 0.0
    %810 = vmatpush1.msra.mxu0 0.0
    %811 = vmatprep.subr.mxu0 0.0
    %812 = vmatpush1.msra.mxu0 0.0
    %813 = vmatprep.subr.mxu0 0.0
    %814 = vmatpush1.msra.mxu0 0.0
    %815 = vmatprep.mubr.f32.mxu0 0.0
    %816 = vmatmul.mubr.f32.gmra.mrb[0].mxu0 %v749
    %v817 = vpop.f32.mrb[0].mxu0
    %v818 = vadd.f32 0.0, %v817
    %v819 = vpop.f32.mrb[0].mxu0
    %820 = vdwg.mxu0
    %v822 = vlaneseq
    %v823 = vshrl.u32 %v822, 7
    %v824 = vsub.s32 %v590, %v823
    %v825 = vrot.slane %v587, %v824
    %v826 = vsel %vm543, %v825, 0
    %828 = vmatprep.subr.mxu0 0.0
    %829 = vmatpush1.msra.mxu0 %v567
    %830 = vmatprep.subr.mxu0 0.0
    %831 = vmatpush1.msra.mxu0 0.0
    %832 = vmatprep.subr.mxu0 0.0
    %833 = vmatpush1.msra.mxu0 0.0
    %834 = vmatprep.subr.mxu0 0.0
    %835 = vmatpush1.msra.mxu0 0.0
    %836 = vmatprep.subr.mxu0 0.0
    %837 = vmatpush1.msra.mxu0 0.0
    %838 = vmatprep.subr.mxu0 0.0
    %839 = vmatpush1.msra.mxu0 0.0
    %840 = vmatprep.subr.mxu0 0.0
    %841 = vmatpush1.msra.mxu0 0.0
    %842 = vmatprep.subr.mxu0 0.0
    %843 = vmatpush1.msra.mxu0 0.0
    %844 = vmatprep.subr.mxu0 0.0
    %845 = vmatpush1.msra.mxu0 0.0
    %846 = vmatprep.subr.mxu0 0.0
    %847 = vmatpush1.msra.mxu0 0.0
    %848 = vmatprep.subr.mxu0 0.0
    %849 = vmatpush1.msra.mxu0 0.0
    %850 = vmatprep.subr.mxu0 0.0
    %851 = vmatpush1.msra.mxu0 0.0
    %852 = vmatprep.subr.mxu0 0.0
    %853 = vmatpush1.msra.mxu0 0.0
    %854 = vmatprep.subr.mxu0 0.0
    %855 = vmatpush1.msra.mxu0 0.0
    %856 = vmatprep.subr.mxu0 0.0
    %857 = vmatpush1.msra.mxu0 0.0
    %858 = vmatprep.subr.mxu0 0.0
    %859 = vmatpush1.msra.mxu0 0.0
    %860 = vmatprep.subr.mxu0 0.0
    %861 = vmatpush1.msra.mxu0 0.0
    %862 = vmatprep.subr.mxu0 0.0
    %863 = vmatpush1.msra.mxu0 0.0
    %864 = vmatprep.subr.mxu0 0.0
    %865 = vmatpush1.msra.mxu0 0.0
    %866 = vmatprep.subr.mxu0 0.0
    %867 = vmatpush1.msra.mxu0 0.0
    %868 = vmatprep.subr.mxu0 0.0
    %869 = vmatpush1.msra.mxu0 0.0
    %870 = vmatprep.subr.mxu0 0.0
    %871 = vmatpush1.msra.mxu0 0.0
    %872 = vmatprep.subr.mxu0 0.0
    %873 = vmatpush1.msra.mxu0 0.0
    %874 = vmatprep.subr.mxu0 0.0
    %875 = vmatpush1.msra.mxu0 0.0
    %876 = vmatprep.subr.mxu0 0.0
    %877 = vmatpush1.msra.mxu0 0.0
    %878 = vmatprep.subr.mxu0 0.0
    %879 = vmatpush1.msra.mxu0 0.0
    %880 = vmatprep.subr.mxu0 0.0
    %881 = vmatpush1.msra.mxu0 0.0
    %882 = vmatprep.subr.mxu0 0.0
    %883 = vmatpush1.msra.mxu0 0.0
    %884 = vmatprep.subr.mxu0 0.0
    %885 = vmatpush1.msra.mxu0 0.0
    %886 = vmatprep.subr.mxu0 0.0
    %887 = vmatpush1.msra.mxu0 0.0
    %888 = vmatprep.subr.mxu0 0.0
    %889 = vmatpush1.msra.mxu0 0.0
    %890 = vmatprep.subr.mxu0 0.0
    %891 = vmatpush1.msra.mxu0 0.0
    %892 = vmatprep.mubr.f32.mxu0 0.0
    %893 = vmatmul.mubr.f32.gmra.mrb[0].mxu0 %v826
    %v894 = vpop.f32.mrb[0].mxu0
    %v895 = vadd.f32 0.0, %v894
    %v896 = vpop.f32.mrb[0].mxu0
    %897 = vdwg.mxu0
    %v899 = vsel %vm543, %v664, 0
    %901 = vmatprep.subr.mxu0 0.0
    %902 = vmatpush1.msra.mxu0 %v245
    %903 = vmatprep.subr.mxu0 0.0
    %904 = vmatpush1.msra.mxu0 0.0
    %905 = vmatprep.subr.mxu0 0.0
    %906 = vmatpush1.msra.mxu0 0.0
    %907 = vmatprep.subr.mxu0 0.0
    %908 = vmatpush1.msra.mxu0 0.0
    %909 = vmatprep.subr.mxu0 0.0
    %910 = vmatpush1.msra.mxu0 0.0
    %911 = vmatprep.subr.mxu0 0.0
    %912 = vmatpush1.msra.mxu0 0.0
    %913 = vmatprep.subr.mxu0 0.0
    %914 = vmatpush1.msra.mxu0 0.0
    %915 = vmatprep.subr.mxu0 0.0
    %916 = vmatpush1.msra.mxu0 0.0
    %917 = vmatprep.subr.mxu0 0.0
    %918 = vmatpush1.msra.mxu0 0.0
    %919 = vmatprep.subr.mxu0 0.0
    %920 = vmatpush1.msra.mxu0 0.0
    %921 = vmatprep.subr.mxu0 0.0
    %922 = vmatpush1.msra.mxu0 0.0
    %923 = vmatprep.subr.mxu0 0.0
    %924 = vmatpush1.msra.mxu0 0.0
    %925 = vmatprep.subr.mxu0 0.0
    %926 = vmatpush1.msra.mxu0 0.0
    %927 = vmatprep.subr.mxu0 0.0
    %928 = vmatpush1.msra.mxu0 0.0
    %929 = vmatprep.subr.mxu0 0.0
    %930 = vmatpush1.msra.mxu0 0.0
    %931 = vmatprep.subr.mxu0 0.0
    %932 = vmatpush1.msra.mxu0 0.0
    %933 = vmatprep.subr.mxu0 0.0
    %934 = vmatpush1.msra.mxu0 0.0
    %935 = vmatprep.subr.mxu0 0.0
    %936 = vmatpush1.msra.mxu0 0.0
    %937 = vmatprep.subr.mxu0 0.0
    %938 = vmatpush1.msra.mxu0 0.0
    %939 = vmatprep.subr.mxu0 0.0
    %940 = vmatpush1.msra.mxu0 0.0
    %941 = vmatprep.subr.mxu0 0.0
    %942 = vmatpush1.msra.mxu0 0.0
    %943 = vmatprep.subr.mxu0 0.0
    %944 = vmatpush1.msra.mxu0 0.0
    %945 = vmatprep.subr.mxu0 0.0
    %946 = vmatpush1.msra.mxu0 0.0
    %947 = vmatprep.subr.mxu0 0.0
    %948 = vmatpush1.msra.mxu0 0.0
    %949 = vmatprep.subr.mxu0 0.0
    %950 = vmatpush1.msra.mxu0 0.0
    %951 = vmatprep.subr.mxu0 0.0
    %952 = vmatpush1.msra.mxu0 0.0
    %953 = vmatprep.subr.mxu0 0.0
    %954 = vmatpush1.msra.mxu0 0.0
    %955 = vmatprep.subr.mxu0 0.0
    %956 = vmatpush1.msra.mxu0 0.0
    %957 = vmatprep.subr.mxu0 0.0
    %958 = vmatpush1.msra.mxu0 0.0
    %959 = vmatprep.subr.mxu0 0.0
    %960 = vmatpush1.msra.mxu0 0.0
    %961 = vmatprep.subr.mxu0 0.0
    %962 = vmatpush1.msra.mxu0 0.0
    %963 = vmatprep.subr.mxu0 0.0
    %964 = vmatpush1.msra.mxu0 0.0
    %965 = vmatprep.mubr.f32.mxu0 0.0
    %966 = vmatmul.mubr.f32.gmra.mrb[0].mxu0 %v899
    %v967 = vpop.f32.mrb[0].mxu0
    %v968 = vadd.f32 0.0, %v967
    %v969 = vpop.f32.mrb[0].mxu0
    %970 = vdwg.mxu0
    %v972 = vsel %vm543, %v741, 0
    %974 = vmatprep.subr.mxu0 0.0
    %975 = vmatpush1.msra.mxu0 %v250
    %976 = vmatprep.subr.mxu0 0.0
    %977 = vmatpush1.msra.mxu0 0.0
    %978 = vmatprep.subr.mxu0 0.0
    %979 = vmatpush1.msra.mxu0 0.0
    %980 = vmatprep.subr.mxu0 0.0
    %981 = vmatpush1.msra.mxu0 0.0
    %982 = vmatprep.subr.mxu0 0.0
    %983 = vmatpush1.msra.mxu0 0.0
    %984 = vmatprep.subr.mxu0 0.0
    %985 = vmatpush1.msra.mxu0 0.0
    %986 = vmatprep.subr.mxu0 0.0
    %987 = vmatpush1.msra.mxu0 0.0
    %988 = vmatprep.subr.mxu0 0.0
    %989 = vmatpush1.msra.mxu0 0.0
    %990 = vmatprep.subr.mxu0 0.0
    %991 = vmatpush1.msra.mxu0 0.0
    %992 = vmatprep.subr.mxu0 0.0
    %993 = vmatpush1.msra.mxu0 0.0
    %994 = vmatprep.subr.mxu0 0.0
    %995 = vmatpush1.msra.mxu0 0.0
    %996 = vmatprep.subr.mxu0 0.0
    %997 = vmatpush1.msra.mxu0 0.0
    %998 = vmatprep.subr.mxu0 0.0
    %999 = vmatpush1.msra.mxu0 0.0
    %1000 = vmatprep.subr.mxu0 0.0
    %1001 = vmatpush1.msra.mxu0 0.0
    %1002 = vmatprep.subr.mxu0 0.0
    %1003 = vmatpush1.msra.mxu0 0.0
    %1004 = vmatprep.subr.mxu0 0.0
    %1005 = vmatpush1.msra.mxu0 0.0
    %1006 = vmatprep.subr.mxu0 0.0
    %1007 = vmatpush1.msra.mxu0 0.0
    %1008 = vmatprep.subr.mxu0 0.0
    %1009 = vmatpush1.msra.mxu0 0.0
    %1010 = vmatprep.subr.mxu0 0.0
    %1011 = vmatpush1.msra.mxu0 0.0
    %1012 = vmatprep.subr.mxu0 0.0
    %1013 = vmatpush1.msra.mxu0 0.0
    %1014 = vmatprep.subr.mxu0 0.0
    %1015 = vmatpush1.msra.mxu0 0.0
    %1016 = vmatprep.subr.mxu0 0.0
    %1017 = vmatpush1.msra.mxu0 0.0
    %1018 = vmatprep.subr.mxu0 0.0
    %1019 = vmatpush1.msra.mxu0 0.0
    %1020 = vmatprep.subr.mxu0 0.0
    %1021 = vmatpush1.msra.mxu0 0.0
    %1022 = vmatprep.subr.mxu0 0.0
    %1023 = vmatpush1.msra.mxu0 0.0
    %1024 = vmatprep.subr.mxu0 0.0
    %1025 = vmatpush1.msra.mxu0 0.0
    %1026 = vmatprep.subr.mxu0 0.0
    %1027 = vmatpush1.msra.mxu0 0.0
    %1028 = vmatprep.subr.mxu0 0.0
    %1029 = vmatpush1.msra.mxu0 0.0
    %1030 = vmatprep.subr.mxu0 0.0
    %1031 = vmatpush1.msra.mxu0 0.0
    %1032 = vmatprep.subr.mxu0 0.0
    %1033 = vmatpush1.msra.mxu0 0.0
    %1034 = vmatprep.subr.mxu0 0.0
    %1035 = vmatpush1.msra.mxu0 0.0
    %1036 = vmatprep.subr.mxu0 0.0
    %1037 = vmatpush1.msra.mxu0 0.0
    %1038 = vmatprep.mubr.f32.mxu0 0.0
    %1039 = vmatmul.mubr.f32.gmra.mrb[0].mxu0 %v972
    %v1040 = vpop.f32.mrb[0].mxu0
    %v1041 = vadd.f32 0.0, %v1040
    %v1042 = vpop.f32.mrb[0].mxu0
    %1043 = vdwg.mxu0
    %v1045 = vsel %vm543, %v818, 0
    %1047 = vmatprep.subr.mxu0 0.0
    %1048 = vmatpush1.msra.mxu0 %v255
    %1049 = vmatprep.subr.mxu0 0.0
    %1050 = vmatpush1.msra.mxu0 0.0
    %1051 = vmatprep.subr.mxu0 0.0
    %1052 = vmatpush1.msra.mxu0 0.0
    %1053 = vmatprep.subr.mxu0 0.0
    %1054 = vmatpush1.msra.mxu0 0.0
    %1055 = vmatprep.subr.mxu0 0.0
    %1056 = vmatpush1.msra.mxu0 0.0
    %1057 = vmatprep.subr.mxu0 0.0
    %1058 = vmatpush1.msra.mxu0 0.0
    %1059 = vmatprep.subr.mxu0 0.0
    %1060 = vmatpush1.msra.mxu0 0.0
    %1061 = vmatprep.subr.mxu0 0.0
    %1062 = vmatpush1.msra.mxu0 0.0
    %1063 = vmatprep.subr.mxu0 0.0
    %1064 = vmatpush1.msra.mxu0 0.0
    %1065 = vmatprep.subr.mxu0 0.0
    %1066 = vmatpush1.msra.mxu0 0.0
    %1067 = vmatprep.subr.mxu0 0.0
    %1068 = vmatpush1.msra.mxu0 0.0
    %1069 = vmatprep.subr.mxu0 0.0
    %1070 = vmatpush1.msra.mxu0 0.0
    %1071 = vmatprep.subr.mxu0 0.0
    %1072 = vmatpush1.msra.mxu0 0.0
    %1073 = vmatprep.subr.mxu0 0.0
    %1074 = vmatpush1.msra.mxu0 0.0
    %1075 = vmatprep.subr.mxu0 0.0
    %1076 = vmatpush1.msra.mxu0 0.0
    %1077 = vmatprep.subr.mxu0 0.0
    %1078 = vmatpush1.msra.mxu0 0.0
    %1079 = vmatprep.subr.mxu0 0.0
    %1080 = vmatpush1.msra.mxu0 0.0
    %1081 = vmatprep.subr.mxu0 0.0
    %1082 = vmatpush1.msra.mxu0 0.0
    %1083 = vmatprep.subr.mxu0 0.0
    %1084 = vmatpush1.msra.mxu0 0.0
    %1085 = vmatprep.subr.mxu0 0.0
    %1086 = vmatpush1.msra.mxu0 0.0
    %1087 = vmatprep.subr.mxu0 0.0
    %1088 = vmatpush1.msra.mxu0 0.0
    %1089 = vmatprep.subr.mxu0 0.0
    %1090 = vmatpush1.msra.mxu0 0.0
    %1091 = vmatprep.subr.mxu0 0.0
    %1092 = vmatpush1.msra.mxu0 0.0
    %1093 = vmatprep.subr.mxu0 0.0
    %1094 = vmatpush1.msra.mxu0 0.0
    %1095 = vmatprep.subr.mxu0 0.0
    %1096 = vmatpush1.msra.mxu0 0.0
    %1097 = vmatprep.subr.mxu0 0.0
    %1098 = vmatpush1.msra.mxu0 0.0
    %1099 = vmatprep.subr.mxu0 0.0
    %1100 = vmatpush1.msra.mxu0 0.0
    %1101 = vmatprep.subr.mxu0 0.0
    %1102 = vmatpush1.msra.mxu0 0.0
    %1103 = vmatprep.subr.mxu0 0.0
    %1104 = vmatpush1.msra.mxu0 0.0
    %1105 = vmatprep.subr.mxu0 0.0
    %1106 = vmatpush1.msra.mxu0 0.0
    %1107 = vmatprep.subr.mxu0 0.0
    %1108 = vmatpush1.msra.mxu0 0.0
    %1109 = vmatprep.subr.mxu0 0.0
    %1110 = vmatpush1.msra.mxu0 0.0
    %1111 = vmatprep.mubr.f32.mxu0 0.0
    %1112 = vmatmul.mubr.f32.gmra.mrb[0].mxu0 %v1045
    %v1113 = vpop.f32.mrb[0].mxu0
    %v1114 = vadd.f32 0.0, %v1113
    %v1115 = vpop.f32.mrb[0].mxu0
    %1116 = vdwg.mxu0
    %v1118 = vsel %vm543, %v895, 0
    %1120 = vmatprep.subr.mxu0 0.0
    %1121 = vmatpush1.msra.mxu0 %v260
    %1122 = vmatprep.subr.mxu0 0.0
    %1123 = vmatpush1.msra.mxu0 0.0
    %1124 = vmatprep.subr.mxu0 0.0
    %1125 = vmatpush1.msra.mxu0 0.0
    %1126 = vmatprep.subr.mxu0 0.0
    %1127 = vmatpush1.msra.mxu0 0.0
    %1128 = vmatprep.subr.mxu0 0.0
    %1129 = vmatpush1.msra.mxu0 0.0
    %1130 = vmatprep.subr.mxu0 0.0
    %1131 = vmatpush1.msra.mxu0 0.0
    %1132 = vmatprep.subr.mxu0 0.0
    %1133 = vmatpush1.msra.mxu0 0.0
    %1134 = vmatprep.subr.mxu0 0.0
    %1135 = vmatpush1.msra.mxu0 0.0
    %1136 = vmatprep.subr.mxu0 0.0
    %1137 = vmatpush1.msra.mxu0 0.0
    %1138 = vmatprep.subr.mxu0 0.0
    %1139 = vmatpush1.msra.mxu0 0.0
    %1140 = vmatprep.subr.mxu0 0.0
    %1141 = vmatpush1.msra.mxu0 0.0
    %1142 = vmatprep.subr.mxu0 0.0
    %1143 = vmatpush1.msra.mxu0 0.0
    %1144 = vmatprep.subr.mxu0 0.0
    %1145 = vmatpush1.msra.mxu0 0.0
    %1146 = vmatprep.subr.mxu0 0.0
    %1147 = vmatpush1.msra.mxu0 0.0
    %1148 = vmatprep.subr.mxu0 0.0
    %1149 = vmatpush1.msra.mxu0 0.0
    %1150 = vmatprep.subr.mxu0 0.0
    %1151 = vmatpush1.msra.mxu0 0.0
    %1152 = vmatprep.subr.mxu0 0.0
    %1153 = vmatpush1.msra.mxu0 0.0
    %1154 = vmatprep.subr.mxu0 0.0
    %1155 = vmatpush1.msra.mxu0 0.0
    %1156 = vmatprep.subr.mxu0 0.0
    %1157 = vmatpush1.msra.mxu0 0.0
    %1158 = vmatprep.subr.mxu0 0.0
    %1159 = vmatpush1.msra.mxu0 0.0
    %1160 = vmatprep.subr.mxu0 0.0
    %1161 = vmatpush1.msra.mxu0 0.0
    %1162 = vmatprep.subr.mxu0 0.0
    %1163 = vmatpush1.msra.mxu0 0.0
    %1164 = vmatprep.subr.mxu0 0.0
    %1165 = vmatpush1.msra.mxu0 0.0
    %1166 = vmatprep.subr.mxu0 0.0
    %1167 = vmatpush1.msra.mxu0 0.0
    %1168 = vmatprep.subr.mxu0 0.0
    %1169 = vmatpush1.msra.mxu0 0.0
    %1170 = vmatprep.subr.mxu0 0.0
    %1171 = vmatpush1.msra.mxu0 0.0
    %1172 = vmatprep.subr.mxu0 0.0
    %1173 = vmatpush1.msra.mxu0 0.0
    %1174 = vmatprep.subr.mxu0 0.0
    %1175 = vmatpush1.msra.mxu0 0.0
    %1176 = vmatprep.subr.mxu0 0.0
    %1177 = vmatpush1.msra.mxu0 0.0
    %1178 = vmatprep.subr.mxu0 0.0
    %1179 = vmatpush1.msra.mxu0 0.0
    %1180 = vmatprep.subr.mxu0 0.0
    %1181 = vmatpush1.msra.mxu0 0.0
    %1182 = vmatprep.subr.mxu0 0.0
    %1183 = vmatpush1.msra.mxu0 0.0
    %1184 = vmatprep.mubr.f32.mxu0 0.0
    %1185 = vmatmul.mubr.f32.gmra.mrb[0].mxu0 %v1118
    %v1186 = vpop.f32.mrb[0].mxu0
    %v1187 = vadd.f32 0.0, %v1186
    %v1188 = vpop.f32.mrb[0].mxu0
    %1189 = vdwg.mxu0
    %v1194 = vrot.slane %v1041, 7
    %vm1195 = vcmask 1041409
    %v1196 = vsel %vm1195, %v1194, %v968
    %v1197 = vrot.slane %v1114, 6
    %vm1198 = vcmask 1042434
    %v1199 = vsel %vm1198, %v1197, %v1196
    %v1200 = vrot.slane %v1187, 5
    %vm1201 = vcmask 1043459
    %v1202 = vsel %vm1201, %v1200, %v1199
    %1204 = vst [vmem:[#allocation7] sm:$0xf] %v1202
    // Predicated region
    $region22: #{tpu_custom_call.1} parent=1 // pred_check
      _
    $region23: #{tpu_custom_call.1} parent=1 // pred_check_branch
      %1206 = sbr.rel (0) target = $region25
    $region24: #{tpu_custom_call.1} parent=1 // pred_region
      %s1208 = ssub.s32 64, 64
      %1209 = vsyncadd [#allocation4], %s1208
      %s1211 = sshll.u32 [#allocation7], 4
      %s1212 = int_to_ptr.vmem [resolvable:$true] %s1211
      %1214 = dma.vmem_to_hbm [thread:$0]  %s1212, 64, %s3, [#allocation4]
    $region25: #{tpu_custom_call.1} parent=1 // pred_fallthru
      _
    // Predicated region
    $region26: #{tpu_custom_call.1} parent=1 // pred_check
      _
    $region27: #{tpu_custom_call.1} parent=1 // pred_check_branch
      %1216 = sbr.rel (0) target = $region29
    $region28: #{tpu_custom_call.1} parent=1 // pred_region
      %1217 = dma.done [#allocation4], 64
    $region29: #{tpu_custom_call.1} parent=1 // pred_fallthru
      _
    %1218 = vsyncpa [#allocation3], 1
    %1219 = vsyncpa [#allocation6], 1
    %1220 = vsyncpa [#allocation4], 1

</llo_original>
